<compile_context>
chip_gen: v5e
topology: v5e:2x2
jax: 0.10.0
libtpu: 0.0.40
codegen_flags: <defaults>
</compile_context>

<pallas_src>
import functools

import jax
import jax.numpy as jnp
import numpy as np
from jax.experimental import pallas as pl
from jax.experimental.pallas import tpu as pltpu

# Feature sizes of the torch module.
D_IN, D_H1, D_H2, D_OUT = 18, 37, 18, 1
# Shared lane-padded width for activations and weight tiles.
LANES = 128

# Row layout of the packed parameter slab (all offsets sublane-aligned).
_W1_OFF = 0        # (128, 128): rows 0:18  cols 0:37  = w1
_W2_OFF = 128      # (128, 128): rows 0:37  cols 0:18  = w2
_W3_OFF = 256      # (128, 128): rows 0:18  cols 0:1   = w3
_B1_OFF = 384      # row 384, cols 0:37 = b1
_B2_OFF = 392      # row 392, cols 0:18 = b2
_B3_OFF = 400      # row 400, cols 0:1  = b3
_SLAB_ROWS = 408   # divisible by 8


def _round_up(n, m):
    return (n + m - 1) // m * m


def pack_params(params):
    """Pack (w1,b1,w2,b2,w3,b3) into one lane-padded (408, 128) f32 slab."""
    w1, b1, w2, b2, w3, b3 = params
    slab = jnp.zeros((_SLAB_ROWS, LANES), jnp.float32)
    slab = slab.at[_W1_OFF:_W1_OFF + D_IN, :D_H1].set(w1.astype(jnp.float32))
    slab = slab.at[_W2_OFF:_W2_OFF + D_H1, :D_H2].set(w2.astype(jnp.float32))
    slab = slab.at[_W3_OFF:_W3_OFF + D_H2, :D_OUT].set(w3.astype(jnp.float32))
    slab = slab.at[_B1_OFF, :D_H1].set(jnp.reshape(b1, (-1,)).astype(jnp.float32))
    slab = slab.at[_B2_OFF, :D_H2].set(jnp.reshape(b2, (-1,)).astype(jnp.float32))
    slab = slab.at[_B3_OFF, :D_OUT].set(jnp.reshape(b3, (-1,)).astype(jnp.float32))
    return slab


def _mlp_kernel(x_ref, slab_ref, o_ref):
    x = x_ref[...]                                       # (TB, 128) f32, lane padded

    # Static slices of the resident parameter slab (zero runtime cost).
    w1 = slab_ref[_W1_OFF:_W1_OFF + LANES, :]
    w2 = slab_ref[_W2_OFF:_W2_OFF + LANES, :]
    w3 = slab_ref[_W3_OFF:_W3_OFF + LANES, :]
    b1 = slab_ref[_B1_OFF:_B1_OFF + 1, :]
    b2 = slab_ref[_B2_OFF:_B2_OFF + 1, :]
    b3 = slab_ref[_B3_OFF:_B3_OFF + 1, :]

    h1 = jnp.maximum(jnp.dot(x, w1, preferred_element_type=jnp.float32) + b1, 0.0)
    h2 = jnp.maximum(jnp.dot(h1, w2, preferred_element_type=jnp.float32) + b2, 0.0)
    y = jnp.dot(h2, w3, preferred_element_type=jnp.float32) + b3
    o_ref[...] = 2.0 * jax.nn.sigmoid(y)                 # lane-dense (TB, 128) store


@functools.partial(jax.jit, static_argnames=("block_b",))
def self_mlp_pallas_batched(x, packed, block_b=256):
    """Batched forward: x (B, 18) -> (B, 1). `packed` = pack_params(params)."""
    B = x.shape[0]
    tb = min(block_b, _round_up(max(B, 1), 8))           # batch tile (multiple of 8)
    pb = _round_up(B, tb)                                # padded batch

    xp = jnp.zeros((pb, LANES), jnp.float32)
    xp = xp.at[:B, :D_IN].set(x.astype(jnp.float32).reshape(B, D_IN))

    out = pl.pallas_call(
        _mlp_kernel,
        out_shape=jax.ShapeDtypeStruct((pb, LANES), jnp.float32),
        grid=(pb // tb,),
        in_specs=[
            pl.BlockSpec((tb, LANES), lambda i: (i, 0)),          # batch tile of x
            pl.BlockSpec((_SLAB_ROWS, LANES), lambda i: (0, 0)),  # resident slab
        ],
        out_specs=pl.BlockSpec((tb, LANES), lambda i: (i, 0)),
        compiler_params=pltpu.CompilerParams(
            dimension_semantics=("parallel",)),
    )(xp, packed)
    return out[:B, :D_OUT]


def self_mlp_pallas(x, params):
    """Matches torch selfMLP.forward: x flattened to (1, 18), returns (1, 1)."""
    x2d = jnp.reshape(x.astype(jnp.float32), (1, -1))
    assert x2d.shape == (1, D_IN), f"expected 18 input features, got {x2d.shape}"
    return self_mlp_pallas_batched(x2d, pack_params(params))


def init_params(key):
    """torch.nn.Linear-style init: U(-1/sqrt(fan_in), 1/sqrt(fan_in)).
    Weights are stored as (in, out) so the kernel computes x @ W."""
    def linear(k, fan_in, fan_out):
        kw, kb = jax.random.split(k)
        bound = 1.0 / np.sqrt(fan_in)
        w = jax.random.uniform(kw, (fan_in, fan_out), jnp.float32, -bound, bound)
        b = jax.random.uniform(kb, (1, fan_out), jnp.float32, -bound, bound)
        return w, b

    k1, k2, k3 = jax.random.split(key, 3)
    w1, b1 = linear(k1, D_IN, D_H1)
    w2, b2 = linear(k2, D_H1, D_H2)
    w3, b3 = linear(k3, D_H2, D_OUT)
    return (w1, b1, w2, b2, w3, b3)


def _reference_batched(x, params):
    """Pure-JAX reference, per-row semantics of the torch module."""
    w1, b1, w2, b2, w3, b3 = params
    h = x.astype(jnp.float32).reshape(x.shape[0], D_IN)
    h = jnp.maximum(h @ w1 + b1, 0.0)
    h = jnp.maximum(h @ w2 + b2, 0.0)
    return 2.0 * jax.nn.sigmoid(h @ w3 + b3)


if __name__ == "__main__":
    key = jax.random.PRNGKey(0)
    k_params, k_x1, k_xb = jax.random.split(key, 3)
    params = init_params(k_params)
    packed = pack_params(params)

    # 1) Module-semantic path: any 18-element input, flattened to (1, 18) -> (1, 1).
    x_single = jax.random.normal(k_x1, (3, 6), dtype=jnp.float32)
    out1 = jax.block_until_ready(self_mlp_pallas(x_single, params))
    ref1 = _reference_batched(jnp.reshape(x_single, (1, -1)), params)
    np.testing.assert_allclose(np.asarray(out1), np.asarray(ref1), rtol=1e-4, atol=1e-4)
    assert out1.shape == (1, 1)

    # 2) Batched path: (40, 18) -> (40, 1); small block_b to exercise multi-step
    #    grid + batch padding at small shapes.
    xb = jax.random.normal(k_xb, (40, D_IN), dtype=jnp.float32)
    out2 = jax.block_until_ready(self_mlp_pallas_batched(xb, packed, block_b=16))
    ref2 = _reference_batched(xb, params)
    np.testing.assert_allclose(np.asarray(out2), np.asarray(ref2), rtol=1e-4, atol=1e-4)
    assert out2.shape == (40, 1)

    print("KERNEL_OK")
</pallas_src>

<mosaic_0001>
module attributes {stable_mosaic.version = 11 : i64} {
  func.func @_mlp_kernel(%arg0: i32, %arg1: memref<8x128xf32, #tpu.memory_space<vmem>>, %arg2: memref<408x128xf32, #tpu.memory_space<vmem>>, %arg3: memref<8x128xf32, #tpu.memory_space<vmem>>) attributes {dimension_semantics = [#tpu.dimension_semantics<parallel>], iteration_bounds = array<i64: 1>, scalar_prefetch = 0 : i64, scratch_operands = 0 : i64, tpu.core_type = #tpu.core_type<tc>, window_params = [{transform_indices = @transform_0, window_bounds = array<i64: 8, 128>}, {pipeline_mode = #tpu.pipeline_mode<synchronous>, transform_indices = @transform_1, window_bounds = array<i64: 408, 128>}, {transform_indices = @transform_2, window_bounds = array<i64: 8, 128>}]} {
    %c0 = arith.constant 0 : index
    %c0_0 = arith.constant 0 : index
    %0 = vector.load %arg1[%c0, %c0_0] : memref<8x128xf32, #tpu.memory_space<vmem>>, vector<8x128xf32>
    %c0_1 = arith.constant 0 : index
    %c0_2 = arith.constant 0 : index
    %1 = vector.load %arg2[%c0_1, %c0_2] : memref<408x128xf32, #tpu.memory_space<vmem>>, vector<128x128xf32>
    %c128 = arith.constant 128 : index
    %c0_3 = arith.constant 0 : index
    %2 = vector.load %arg2[%c128, %c0_3] : memref<408x128xf32, #tpu.memory_space<vmem>>, vector<128x128xf32>
    %c256 = arith.constant 256 : index
    %c0_4 = arith.constant 0 : index
    %3 = vector.load %arg2[%c256, %c0_4] : memref<408x128xf32, #tpu.memory_space<vmem>>, vector<128x128xf32>
    %c384 = arith.constant 384 : index
    %c0_5 = arith.constant 0 : index
    %4 = vector.load %arg2[%c384, %c0_5] : memref<408x128xf32, #tpu.memory_space<vmem>>, vector<1x128xf32>
    %c392 = arith.constant 392 : index
    %c0_6 = arith.constant 0 : index
    %5 = vector.load %arg2[%c392, %c0_6] : memref<408x128xf32, #tpu.memory_space<vmem>>, vector<1x128xf32>
    %c400 = arith.constant 400 : index
    %c0_7 = arith.constant 0 : index
    %6 = vector.load %arg2[%c400, %c0_7] : memref<408x128xf32, #tpu.memory_space<vmem>>, vector<1x128xf32>
    %cst = arith.constant dense<0.000000e+00> : vector<8x128xf32>
    %7 = tpu.matmul %0, %1, %cst {dimension_numbers = #tpu.dot_dimension_numbers<[1], [0], [0], [1], [0, 0, 1, 1], [], []>} : vector<8x128xf32>, vector<128x128xf32>, vector<8x128xf32> -> vector<8x128xf32>
    %8 = vector.broadcast %4 : vector<1x128xf32> to vector<8x128xf32>
    %9 = arith.addf %7, %8 : vector<8x128xf32>
    %cst_8 = arith.constant 0.000000e+00 : f32
    %10 = vector.broadcast %cst_8 : f32 to vector<8x128xf32>
    %11 = arith.maximumf %9, %10 : vector<8x128xf32>
    %cst_9 = arith.constant dense<0.000000e+00> : vector<8x128xf32>
    %12 = tpu.matmul %11, %2, %cst_9 {dimension_numbers = #tpu.dot_dimension_numbers<[1], [0], [0], [1], [0, 0, 1, 1], [], []>} : vector<8x128xf32>, vector<128x128xf32>, vector<8x128xf32> -> vector<8x128xf32>
    %13 = vector.broadcast %5 : vector<1x128xf32> to vector<8x128xf32>
    %14 = arith.addf %12, %13 : vector<8x128xf32>
    %cst_10 = arith.constant 0.000000e+00 : f32
    %15 = vector.broadcast %cst_10 : f32 to vector<8x128xf32>
    %16 = arith.maximumf %14, %15 : vector<8x128xf32>
    %cst_11 = arith.constant dense<0.000000e+00> : vector<8x128xf32>
    %17 = tpu.matmul %16, %3, %cst_11 {dimension_numbers = #tpu.dot_dimension_numbers<[1], [0], [0], [1], [0, 0, 1, 1], [], []>} : vector<8x128xf32>, vector<128x128xf32>, vector<8x128xf32> -> vector<8x128xf32>
    %18 = vector.broadcast %6 : vector<1x128xf32> to vector<8x128xf32>
    %19 = arith.addf %17, %18 : vector<8x128xf32>
    %20 = arith.negf %19 : vector<8x128xf32>
    %21 = math.exp %20 : vector<8x128xf32>
    %cst_12 = arith.constant 1.000000e+00 : f32
    %22 = vector.broadcast %cst_12 : f32 to vector<8x128xf32>
    %23 = arith.addf %22, %21 : vector<8x128xf32>
    %24 = arith.divf %22, %23 : vector<8x128xf32>
    %cst_13 = arith.constant 2.000000e+00 : f32
    %25 = vector.broadcast %cst_13 : f32 to vector<8x128xf32>
    %26 = arith.mulf %25, %24 : vector<8x128xf32>
    %c0_14 = arith.constant 0 : index
    %c0_15 = arith.constant 0 : index
    %27 = vector.load %arg3[%c0_14, %c0_15] : memref<8x128xf32, #tpu.memory_space<vmem>>, vector<8x128xf32>
    tpu.vector_store %arg3[%c0_14, %c0_15], %26 {strides = array<i32>} : memref<8x128xf32, #tpu.memory_space<vmem>>, vector<8x128xf32>,
    return
  }
  func.func @transform_0(%arg0: i32) -> (i32, i32) {
    %c0_i32 = arith.constant 0 : i32
    %c0_i32_0 = arith.constant 0 : i32
    return %arg0, %c0_i32 : i32, i32
  }
  func.func @transform_1(%arg0: i32) -> (i32, i32) {
    %c0_i32 = arith.constant 0 : i32
    %c0_i32_0 = arith.constant 0 : i32
    %c0_i32_1 = arith.constant 0 : i32
    return %c0_i32, %c0_i32_0 : i32, i32
  }
  func.func @transform_2(%arg0: i32) -> (i32, i32) {
    %c0_i32 = arith.constant 0 : i32
    %c0_i32_0 = arith.constant 0 : i32
    return %arg0, %c0_i32 : i32, i32
  }
}

</mosaic_0001>

<llo_original>
// kernel: self_mlp_pallas_batched.1
$region0: #{self_mlp_pallas_batched.1}
  #allocation0 [shape = 'u32[]', space=smem, size = 0x4, offset = 0x4, fixed_abs, tag = 'smem constant byte address 0x4 - core index']
  #allocation1 [shape = 'u32[72,128]{1,0:T(1,128)}', space=vmem, size = 0x9000, scoped, tag = 'internal scratch']
  %s0 = inlined_call_operand.vmem [shape: f32[8,128], index: 0, kind: input, shape index: {}]
  %s1 = inlined_call_operand.hbm [shape: f32[408,128], index: 1, kind: input, shape index: {}]
  %s2 = inlined_call_operand.vmem [shape: f32[8,128], index: 2, kind: output, shape index: {}]
  %s3 = sld [smem:[#allocation0]]
  $region22: #{self_mlp_pallas_batched.1} parent=0
    _
  %s5 = ssub.s32 1, %s3
  %s6 = scalar_select 0, %s5, %s3
  $region1: #{self_mlp_pallas_batched.1} parent=0
    #allocation2 [shape = 'u8[208896]{0}', space=vmem, size = 0x33000, scoped, tag = 'input window, operand 1, single buffered']
    #allocation3 [shape = 's32[1]{0}', space=sflag, size = 0x4, scoped, tag = 'scoped memory for self_mlp_pallas_batched.1']
    %7 = vsyncpa [#allocation3], 0
    // Predicated region
    $region2: #{self_mlp_pallas_batched.1} parent=1 // pred_check
      _
    $region3: #{self_mlp_pallas_batched.1} parent=1 // pred_check_branch
      %9 = sbr.rel (0) target = $region5
    $region4: #{self_mlp_pallas_batched.1} parent=1 // pred_region
      _
    $region5: #{self_mlp_pallas_batched.1} parent=1 // pred_fallthru
      _
    // Predicated region
    $region6: #{self_mlp_pallas_batched.1} parent=1 // pred_check
      _
    $region7: #{self_mlp_pallas_batched.1} parent=1 // pred_check_branch
      %11 = sbr.rel (0) target = $region9
    $region8: #{self_mlp_pallas_batched.1} parent=1 // pred_region
      %13 = vsyncadd [#allocation3], 0
      %s14 = sshll.u32 %s1, 4
      %s15 = int_to_ptr.hbm [resolvable:$true] %s14
      %s16 = sshll.u32 [#allocation2], 4
      %s17 = int_to_ptr.vmem [resolvable:$true] %s16
      %22 = dma.hbm_to_vmem [thread:$0]  %s15, 6528, %s17, [#allocation3], 128, 128, 8
    $region9: #{self_mlp_pallas_batched.1} parent=1 // pred_fallthru
      _
    // Predicated region
    $region10: #{self_mlp_pallas_batched.1} parent=1 // pred_check
      _
    $region11: #{self_mlp_pallas_batched.1} parent=1 // pred_check_branch
      %24 = sbr.rel (0) target = $region13
    $region12: #{self_mlp_pallas_batched.1} parent=1 // pred_region
      %26 = dma.done [#allocation3], 6528
    $region13: #{self_mlp_pallas_batched.1} parent=1 // pred_fallthru
      _
    %v27 = vld [vmem:[%s0] sm:$0xff]
    %v28 = vld [vmem:[#allocation2] sm:$0xff]
    %v29 = vld [vmem:[#allocation2 + $0x8] sm:$0xff]
    %v30 = vld [vmem:[#allocation2 + $0x10] sm:$0xff]
    %v31 = vld [vmem:[#allocation2 + $0x18] sm:$0xff]
    %v32 = vld [vmem:[#allocation2 + $0x20] sm:$0xff]
    %v33 = vld [vmem:[#allocation2 + $0x28] sm:$0xff]
    %v34 = vld [vmem:[#allocation2 + $0x30] sm:$0xff]
    %v35 = vld [vmem:[#allocation2 + $0x38] sm:$0xff]
    %v36 = vld [vmem:[#allocation2 + $0x40] sm:$0xff]
    %v37 = vld [vmem:[#allocation2 + $0x48] sm:$0xff]
    %v38 = vld [vmem:[#allocation2 + $0x50] sm:$0xff]
    %v39 = vld [vmem:[#allocation2 + $0x58] sm:$0xff]
    %v40 = vld [vmem:[#allocation2 + $0x60] sm:$0xff]
    %v41 = vld [vmem:[#allocation2 + $0x68] sm:$0xff]
    %v42 = vld [vmem:[#allocation2 + $0x70] sm:$0xff]
    %v43 = vld [vmem:[#allocation2 + $0x78] sm:$0xff]
    %v44 = vld [vmem:[#allocation2 + $0x80] sm:$0xff]
    %v45 = vld [vmem:[#allocation2 + $0x88] sm:$0xff]
    %v46 = vld [vmem:[#allocation2 + $0x90] sm:$0xff]
    %v47 = vld [vmem:[#allocation2 + $0x98] sm:$0xff]
    %v48 = vld [vmem:[#allocation2 + $0xa0] sm:$0xff]
    %v49 = vld [vmem:[#allocation2 + $0xa8] sm:$0xff]
    %v50 = vld [vmem:[#allocation2 + $0xb0] sm:$0xff]
    %v51 = vld [vmem:[#allocation2 + $0xb8] sm:$0xff]
    %v52 = vld [vmem:[#allocation2 + $0xc0] sm:$0xff]
    %v53 = vld [vmem:[#allocation2 + $0xc8] sm:$0xff]
    %v54 = vld [vmem:[#allocation2 + $0xd0] sm:$0xff]
    %v55 = vld [vmem:[#allocation2 + $0xd8] sm:$0xff]
    %v56 = vld [vmem:[#allocation2 + $0xe0] sm:$0xff]
    %v57 = vld [vmem:[#allocation2 + $0xe8] sm:$0xff]
    %v58 = vld [vmem:[#allocation2 + $0xf0] sm:$0xff]
    %v59 = vld [vmem:[#allocation2 + $0xf8] sm:$0xff]
    %v60 = vld [vmem:[#allocation2 + $0x100] sm:$0xff]
    %v61 = vld [vmem:[#allocation2 + $0x108] sm:$0xff]
    %v62 = vld [vmem:[#allocation2 + $0x110] sm:$0xff]
    %v63 = vld [vmem:[#allocation2 + $0x118] sm:$0xff]
    %v64 = vld [vmem:[#allocation2 + $0x120] sm:$0xff]
    %v65 = vld [vmem:[#allocation2 + $0x128] sm:$0xff]
    %v66 = vld [vmem:[#allocation2 + $0x130] sm:$0xff]
    %v67 = vld [vmem:[#allocation2 + $0x138] sm:$0xff]
    %v68 = vld [vmem:[#allocation2 + $0x140] sm:$0xff]
    %v69 = vld [vmem:[#allocation2 + $0x148] sm:$0xff]
    %v70 = vld [vmem:[#allocation2 + $0x150] sm:$0xff]
    %v71 = vld [vmem:[#allocation2 + $0x158] sm:$0xff]
    %v72 = vld [vmem:[#allocation2 + $0x160] sm:$0xff]
    %v73 = vld [vmem:[#allocation2 + $0x168] sm:$0xff]
    %v74 = vld [vmem:[#allocation2 + $0x170] sm:$0xff]
    %v75 = vld [vmem:[#allocation2 + $0x178] sm:$0xff]
    %v76 = vld [vmem:[#allocation2 + $0x180] sm:$0x1]
    %v77 = vld [vmem:[#allocation2 + $0x188] sm:$0x1]
    %v78 = vld [vmem:[#allocation2 + $0x190] sm:$0x1]
    %v79 = vperm.slane %v76, 0
    %80 = vmatpush.msra.mxu0 %v43
    %81 = vmatpush.msra.mxu0 %v42
    %82 = vmatpush.msra.mxu0 %v41
    %83 = vmatpush.msra.mxu0 %v40
    %84 = vmatpush.msra.mxu0 %v39
    %85 = vmatpush.msra.mxu0 %v38
    %86 = vmatpush.msra.mxu0 %v37
    %87 = vmatpush.msra.mxu0 %v36
    %88 = vmatpush.msra.mxu0 %v35
    %89 = vmatpush.msra.mxu0 %v34
    %90 = vmatpush.msra.mxu0 %v33
    %91 = vmatpush.msra.mxu0 %v32
    %92 = vmatpush.msra.mxu0 %v31
    %93 = vmatpush.msra.mxu0 %v30
    %94 = vmatpush.msra.mxu0 %v29
    %95 = vmatpush.msra.mxu0 %v28
    %96 = vmatmul.f32.gmra.mxu0 %v27
    %v97 = vpop.f32.mrf.mxu0
    %v98 = vadd.f32 %v79, %v97
    %99 = vdwg.mxu0
    %v100 = vmax.f32 %v98, 0.0
    %v101 = vperm.slane %v77, 0
    %102 = vmatpush.msra.mxu0 %v59
    %103 = vmatpush.msra.mxu0 %v58
    %104 = vmatpush.msra.mxu0 %v57
    %105 = vmatpush.msra.mxu0 %v56
    %106 = vmatpush.msra.mxu0 %v55
    %107 = vmatpush.msra.mxu0 %v54
    %108 = vmatpush.msra.mxu0 %v53
    %109 = vmatpush.msra.mxu0 %v52
    %110 = vmatpush.msra.mxu0 %v51
    %111 = vmatpush.msra.mxu0 %v50
    %112 = vmatpush.msra.mxu0 %v49
    %113 = vmatpush.msra.mxu0 %v48
    %114 = vmatpush.msra.mxu0 %v47
    %115 = vmatpush.msra.mxu0 %v46
    %116 = vmatpush.msra.mxu0 %v45
    %117 = vmatpush.msra.mxu0 %v44
    %118 = vmatmul.f32.gmra.mxu0 %v100
    %v119 = vpop.f32.mrf.mxu0
    %v120 = vadd.f32 %v101, %v119
    %121 = vdwg.mxu0
    %v122 = vmax.f32 %v120, 0.0
    %v123 = vperm.slane %v78, 0
    %124 = vmatpush.msra.mxu0 %v75
    %125 = vmatpush.msra.mxu0 %v74
    %126 = vmatpush.msra.mxu0 %v73
    %127 = vmatpush.msra.mxu0 %v72
    %128 = vmatpush.msra.mxu0 %v71
    %129 = vmatpush.msra.mxu0 %v70
    %130 = vmatpush.msra.mxu0 %v69
    %131 = vmatpush.msra.mxu0 %v68
    %132 = vmatpush.msra.mxu0 %v67
    %133 = vmatpush.msra.mxu0 %v66
    %134 = vmatpush.msra.mxu0 %v65
    %135 = vmatpush.msra.mxu0 %v64
    %136 = vmatpush.msra.mxu0 %v63
    %137 = vmatpush.msra.mxu0 %v62
    %138 = vmatpush.msra.mxu0 %v61
    %139 = vmatpush.msra.mxu0 %v60
    %140 = vmatmul.f32.gmra.mxu0 %v122
    %v141 = vpop.f32.mrf.mxu0
    %v142 = vadd.f32 %v123, %v141
    %143 = vdwg.mxu0
    %v144 = vxor.u32 %v142, 2147483648
    %v145 = vmul.f32 %v144, 1.442695
    %v146 = vpow.pop %v145
    %v147 = vadd.f32 %v146, 1.0
    %v148 = vrcp.pop %v147
    %v149 = vmul.f32 %v147, %v148
    %v150 = vsub.f32 1.0, %v149
    %v151 = vmul.f32 %v148, %v150
    %v152 = vadd.f32 %v148, %v151
    %vm153 = vweird.f32 %v147
    %vm154 = vweird.f32 %v148
    %vm155 = vmor %vm153, %vm154
    %v156 = vsel %vm155, %v148, %v152
    %v157 = vand.u32 2147483647, %v147
    %vm158 = vcmp.eq.f32.partialorder %v157, 8.507059e+37
    %v159 = vand.u32 %v147, 2147483648
    %v160 = vor.u32 1.1754944e-38, %v159
    %v161 = vsel %vm158, %v160, %v156
    %v162 = vmul.f32 1.0, %v161
    %v163 = vmul.f32 %v162, 2.0
    %164 = vst [vmem:[%s2] sm:$0xff] %v163
    // Predicated region
    $region14: #{self_mlp_pallas_batched.1} parent=1 // pred_check
      _
    $region15: #{self_mlp_pallas_batched.1} parent=1 // pred_check_branch
      %166 = sbr.rel (0) target = $region17
    $region16: #{self_mlp_pallas_batched.1} parent=1 // pred_region
      _
    $region17: #{self_mlp_pallas_batched.1} parent=1 // pred_fallthru
      _
    // Predicated region
    $region18: #{self_mlp_pallas_batched.1} parent=1 // pred_check
      _
    $region19: #{self_mlp_pallas_batched.1} parent=1 // pred_check_branch
      %168 = sbr.rel (0) target = $region21
    $region20: #{self_mlp_pallas_batched.1} parent=1 // pred_region
      _
    $region21: #{self_mlp_pallas_batched.1} parent=1 // pred_fallthru
      _
    %169 = vsyncpa [#allocation3], 1

</llo_original>
